<compile_context>
chip_gen: v6e
topology: v6e:2x2x1
jax: 0.10.0
libtpu: 0.0.40
codegen_flags: <defaults>
</compile_context>

<pallas_src>
import math
import functools

import jax
import jax.numpy as jnp
from jax.experimental import pallas as pl
from jax.experimental.pallas import tpu as pltpu


def _mhsa_kernel(x_ref, wq_ref, wkv_ref, bq_ref, bkv_ref, o_ref, kv_ref, ctx_ref,
                 *, num_heads: int, d_k: int, q_tile: int, k_tile: int):
    """One (batch, query-tile) grid step.

    x_ref   : (S, D)   f32   activations for this batch (resident across q-tiles)
    wq_ref  : (D, D)   bf16  Q projection weight      (single-buffered, constant index)
    wkv_ref : (D, 2D)  bf16  fused K/V projection     (single-buffered, constant index)
    bq_ref  : (1, D)   f32
    bkv_ref : (1, 2D)  f32
    o_ref   : (TQ, D)  f32   output tile
    kv_ref  : (S, 2D)  bf16  VMEM scratch: projected K/V, computed once per batch
    ctx_ref : (TQ, D)  f32   VMEM scratch: merged-head context for this q-tile
    """
    f32 = jnp.float32
    bf16 = jnp.bfloat16
    d_model = num_heads * d_k
    S = x_ref.shape[0]
    num_k_tiles = S // k_tile
    qi = pl.program_id(1)

    # --- K/V projection: once per batch element, kept resident in VMEM scratch. ---
    @pl.when(qi == 0)
    def _():
        xkv = x_ref[...].astype(bf16)                                        # (S, D)
        kv = jnp.dot(xkv, wkv_ref[...], preferred_element_type=f32)          # (S, 2D)
        kv_ref[...] = (kv + bkv_ref[...]).astype(bf16)

    # --- Q projection for this query tile only (sliced from the resident x block). ---
    q_start = pl.multiple_of(qi * q_tile, q_tile)
    xq = x_ref[pl.ds(q_start, q_tile), :].astype(bf16)                       # (TQ, D)
    scale = 1.0 / math.sqrt(d_k)
    q = (jnp.dot(xq, wq_ref[...], preferred_element_type=f32) + bq_ref[...]) * scale
    q = q.astype(bf16)                                                       # (TQ, D)

    # Contract the minor (d_k) dims of both operands; no value-level transpose.
    dnums = (((1,), (1,)), ((), ()))

    # --- Per-head attention, K-tiled online softmax (flash-style accumulators). ---
    for h in range(num_heads):
        lo = h * d_k
        qh = q[:, lo:lo + d_k]                                               # (TQ, dk)
        m = jnp.full((q_tile, 1), -jnp.inf, f32)
        l = jnp.zeros((q_tile, 1), f32)
        acc = jnp.zeros((q_tile, d_k), f32)
        for kt in range(num_k_tiles):                                        # static loop
            ks = kt * k_tile
            kh = kv_ref[ks:ks + k_tile, lo:lo + d_k]                         # (TK, dk) bf16
            vh = kv_ref[ks:ks + k_tile, d_model + lo:d_model + lo + d_k]     # (TK, dk) bf16
            s = jax.lax.dot_general(qh, kh, dnums,
                                    preferred_element_type=f32)              # (TQ, TK)
            m_new = jnp.maximum(m, jnp.max(s, axis=-1, keepdims=True))
            alpha = jnp.exp(m - m_new)
            p = jnp.exp(s - m_new)
            l = alpha * l + jnp.sum(p, axis=-1, keepdims=True)
            acc = alpha * acc + jnp.dot(p.astype(bf16), vh,
                                        preferred_element_type=f32)
            m = m_new
        ctx_ref[:, lo:lo + d_k] = acc * pl.reciprocal(l, approx=True)

    # --- Single lane-dense (TQ, D) output store. ---
    o_ref[...] = ctx_ref[...].astype(o_ref.dtype)


def _device_kind() -> str:
    try:
        return jax.devices()[0].device_kind.lower()
    except Exception:
        return ""


def multi_head_self_attention(x, wq, wk, wv, bq, bk, bv, *,
                              num_heads: int,
                              q_tile: int | None = None,
                              k_tile: int | None = None):
    """x: (B, S, D); wq/wk/wv: (D, D) in (in, out) layout; biases: (D,)."""
    B, S, D = x.shape
    assert D % num_heads == 0
    d_k = D // num_heads

    kind = _device_kind()
    is_v7 = "v7" in kind

    if q_tile is None:
        max_q = 256 if is_v7 else 512          # bigger tiles on v5e/v6e (128 MiB VMEM)
        q_tile = S if S <= max_q else max_q
    assert S % q_tile == 0, "S must be divisible by the query tile"
    if k_tile is None:
        k_tile = S if S <= 512 else 512
    assert S % k_tile == 0, "S must be divisible by the key tile"
    num_q_tiles = S // q_tile

    # Parameter prep (plain JAX, outside the kernel): bf16 weights, fused K/V
    # projection, biases as (1, N) rows for clean broadcast inside the kernel.
    wq_b = wq.astype(jnp.bfloat16)                                   # (D, D)
    wkv_b = jnp.concatenate([wk, wv], axis=1).astype(jnp.bfloat16)   # (D, 2D)
    bq2 = bq.reshape(1, D).astype(jnp.float32)
    bkv2 = jnp.concatenate([bk, bv]).reshape(1, 2 * D).astype(jnp.float32)

    kernel = functools.partial(_mhsa_kernel, num_heads=num_heads, d_k=d_k,
                               q_tile=q_tile, k_tile=k_tile)

    single = pl.Buffered(1)   # constant-index operands: no double-buffering
    x_spec = pl.BlockSpec((pl.Squeezed(), S, D), lambda b, qi: (b, 0, 0))
    wq_spec = pl.BlockSpec((D, D), lambda b, qi: (0, 0), pipeline_mode=single)
    wkv_spec = pl.BlockSpec((D, 2 * D), lambda b, qi: (0, 0), pipeline_mode=single)
    bq_spec = pl.BlockSpec((1, D), lambda b, qi: (0, 0), pipeline_mode=single)
    bkv_spec = pl.BlockSpec((1, 2 * D), lambda b, qi: (0, 0), pipeline_mode=single)
    out_spec = pl.BlockSpec((pl.Squeezed(), q_tile, D), lambda b, qi: (b, qi, 0))

    vmem_limit = (56 if is_v7 else 100) * 1024 * 1024

    return pl.pallas_call(
        kernel,
        out_shape=jax.ShapeDtypeStruct((B, S, D), x.dtype),
        grid_spec=pltpu.PrefetchScalarGridSpec(
            num_scalar_prefetch=0,
            grid=(B, num_q_tiles),
            in_specs=[x_spec, wq_spec, wkv_spec, bq_spec, bkv_spec],
            out_specs=out_spec,
            scratch_shapes=[pltpu.VMEM((S, 2 * D), jnp.bfloat16),   # resident K/V
                            pltpu.VMEM((q_tile, D), jnp.float32)],  # merged context
        ),
        compiler_params=pltpu.CompilerParams(
            dimension_semantics=("parallel", "arbitrary"),
            vmem_limit_bytes=vmem_limit),
    )(x, wq_b, wkv_b, bq2, bkv2)


def _reference(x, wq, wk, wv, bq, bk, bv, *, num_heads: int):
    """Plain-JAX f32 reference mirroring the PyTorch forward (mask=None)."""
    B, S, D = x.shape
    d_k = D // num_heads
    q = x @ wq + bq
    k = x @ wk + bk
    v = x @ wv + bv
    q = q.reshape(B, S, num_heads, d_k).transpose(0, 2, 1, 3)
    k = k.reshape(B, S, num_heads, d_k).transpose(0, 2, 1, 3)
    v = v.reshape(B, S, num_heads, d_k).transpose(0, 2, 1, 3)
    scores = jnp.einsum("bhqd,bhkd->bhqk", q, k) / math.sqrt(d_k)
    attn = jax.nn.softmax(scores, axis=-1)
    ctx = jnp.einsum("bhqk,bhkd->bhqd", attn, v)
    return ctx.transpose(0, 2, 1, 3).reshape(B, S, D)


if __name__ == "__main__":
    B, S, D, H = 2, 8, 32, 4      # batch, seq, d_model, num_attention_heads
    key = jax.random.PRNGKey(0)
    kx, kwq, kwk, kwv, kbq, kbk, kbv = jax.random.split(key, 7)

    # xavier_uniform_(gain=1): bound = sqrt(6 / (fan_in + fan_out))
    w_bound = math.sqrt(6.0 / (D + D))
    # nn.Linear default bias init: uniform(-1/sqrt(in_features), 1/sqrt(in_features))
    b_bound = 1.0 / math.sqrt(D)

    # Weights stored in (in, out) layout so that y = x @ W + b == nn.Linear.
    wq = jax.random.uniform(kwq, (D, D), jnp.float32, -w_bound, w_bound)
    wk = jax.random.uniform(kwk, (D, D), jnp.float32, -w_bound, w_bound)
    wv = jax.random.uniform(kwv, (D, D), jnp.float32, -w_bound, w_bound)
    bq = jax.random.uniform(kbq, (D,), jnp.float32, -b_bound, b_bound)
    bk = jax.random.uniform(kbk, (D,), jnp.float32, -b_bound, b_bound)
    bv = jax.random.uniform(kbv, (D,), jnp.float32, -b_bound, b_bound)

    x = jax.random.normal(kx, (B, S, D), jnp.float32)

    out = multi_head_self_attention(x, wq, wk, wv, bq, bk, bv, num_heads=H)
    out = jax.block_until_ready(out)

    ref = _reference(x, wq, wk, wv, bq, bk, bv, num_heads=H)
    assert out.shape == (B, S, D)
    # bf16 MXU operands (f32 accumulation / f32 softmax) -> bf16-level tolerance.
    assert jnp.allclose(out, ref, rtol=5e-2, atol=5e-2), "mismatch vs reference"

    print("KERNEL_OK")
</pallas_src>

<mosaic_0001>
module attributes {stable_mosaic.version = 11 : i64} {
  func.func @_mhsa_kernel(%arg0: i32, %arg1: i32, %arg2: memref<1x8x32xf32, #tpu.memory_space<vmem>>, %arg3: memref<32x32xbf16, #tpu.memory_space<vmem>>, %arg4: memref<32x64xbf16, #tpu.memory_space<vmem>>, %arg5: memref<1x32xf32, #tpu.memory_space<vmem>>, %arg6: memref<1x64xf32, #tpu.memory_space<vmem>>, %arg7: memref<1x8x32xf32, #tpu.memory_space<vmem>>, %arg8: memref<8x64xbf16, #tpu.memory_space<vmem>>, %arg9: memref<8x32xf32, #tpu.memory_space<vmem>>) attributes {dimension_semantics = [#tpu.dimension_semantics<parallel>, #tpu.dimension_semantics<arbitrary>], iteration_bounds = array<i64: 2, 1>, scalar_prefetch = 0 : i64, scratch_operands = 2 : i64, tpu.core_type = #tpu.core_type<tc>, window_params = [{transform_indices = @transform_0, window_bounds = array<i64: 1, 8, 32>}, {pipeline_mode = #tpu.pipeline_mode<synchronous>, transform_indices = @transform_1, window_bounds = array<i64: 32, 32>}, {pipeline_mode = #tpu.pipeline_mode<synchronous>, transform_indices = @transform_2, window_bounds = array<i64: 32, 64>}, {pipeline_mode = #tpu.pipeline_mode<synchronous>, transform_indices = @transform_3, window_bounds = array<i64: 1, 32>}, {pipeline_mode = #tpu.pipeline_mode<synchronous>, transform_indices = @transform_4, window_bounds = array<i64: 1, 64>}, {transform_indices = @transform_5, window_bounds = array<i64: 1, 8, 32>}]} {
    %c0_i32 = arith.constant 0 : i32
    %0 = arith.cmpi eq, %arg1, %c0_i32 : i32
    %1 = arith.extui %0 : i1 to i32
    %c0_i32_0 = arith.constant 0 : i32
    %2 = arith.cmpi ne, %1, %c0_i32_0 : i32
    scf.if %2 {
      %c0_57 = arith.constant 0 : index
      %c0_58 = arith.constant 0 : index
      %c0_59 = arith.constant 0 : index
      %133 = vector.load %arg2[%c0_57, %c0_58, %c0_59] : memref<1x8x32xf32, #tpu.memory_space<vmem>>, vector<1x8x32xf32>
      %134 = vector.shape_cast %133 : vector<1x8x32xf32> to vector<8x32xf32>
      %135 = arith.truncf %134 : vector<8x32xf32> to vector<8x32xbf16>
      %c0_60 = arith.constant 0 : index
      %c0_61 = arith.constant 0 : index
      %136 = vector.load %arg4[%c0_60, %c0_61] : memref<32x64xbf16, #tpu.memory_space<vmem>>, vector<32x64xbf16>
      %cst_62 = arith.constant dense<0.000000e+00> : vector<8x64xf32>
      %137 = tpu.matmul %135, %136, %cst_62 {dimension_numbers = #tpu.dot_dimension_numbers<[1], [0], [0], [1], [0, 0, 1, 1], [], []>} : vector<8x32xbf16>, vector<32x64xbf16>, vector<8x64xf32> -> vector<8x64xf32>
      %c0_63 = arith.constant 0 : index
      %c0_64 = arith.constant 0 : index
      %138 = vector.load %arg6[%c0_63, %c0_64] : memref<1x64xf32, #tpu.memory_space<vmem>>, vector<1x64xf32>
      %139 = vector.broadcast %138 : vector<1x64xf32> to vector<8x64xf32>
      %140 = arith.addf %137, %139 : vector<8x64xf32>
      %141 = arith.truncf %140 : vector<8x64xf32> to vector<8x64xbf16>
      %c0_65 = arith.constant 0 : index
      %c0_66 = arith.constant 0 : index
      %142 = vector.load %arg8[%c0_65, %c0_66] : memref<8x64xbf16, #tpu.memory_space<vmem>>, vector<8x64xbf16>
      tpu.vector_store %arg8[%c0_65, %c0_66], %141 {strides = array<i32>} : memref<8x64xbf16, #tpu.memory_space<vmem>>, vector<8x64xbf16>,
    } else {
    }
    %c8_i32 = arith.constant 8 : i32
    %3 = arith.muli %arg1, %c8_i32 : i32
    %4 = tpu.assume_multiple %3, 8 : i32
    %c0 = arith.constant 0 : index
    %5 = arith.index_cast %4 : i32 to index
    %c0_1 = arith.constant 0 : index
    %6 = vector.load %arg2[%c0, %5, %c0_1] : memref<1x8x32xf32, #tpu.memory_space<vmem>>, vector<1x8x32xf32>
    %7 = vector.shape_cast %6 : vector<1x8x32xf32> to vector<8x32xf32>
    %8 = arith.truncf %7 : vector<8x32xf32> to vector<8x32xbf16>
    %c0_2 = arith.constant 0 : index
    %c0_3 = arith.constant 0 : index
    %9 = vector.load %arg3[%c0_2, %c0_3] : memref<32x32xbf16, #tpu.memory_space<vmem>>, vector<32x32xbf16>
    %cst = arith.constant dense<0.000000e+00> : vector<8x32xf32>
    %10 = tpu.matmul %8, %9, %cst {dimension_numbers = #tpu.dot_dimension_numbers<[1], [0], [0], [1], [0, 0, 1, 1], [], []>} : vector<8x32xbf16>, vector<32x32xbf16>, vector<8x32xf32> -> vector<8x32xf32>
    %c0_4 = arith.constant 0 : index
    %c0_5 = arith.constant 0 : index
    %11 = vector.load %arg5[%c0_4, %c0_5] : memref<1x32xf32, #tpu.memory_space<vmem>>, vector<1x32xf32>
    %12 = vector.broadcast %11 : vector<1x32xf32> to vector<8x32xf32>
    %13 = arith.addf %10, %12 : vector<8x32xf32>
    %cst_6 = arith.constant 0.353553385 : f32
    %14 = vector.broadcast %cst_6 : f32 to vector<8x32xf32>
    %15 = arith.mulf %13, %14 : vector<8x32xf32>
    %16 = arith.truncf %15 : vector<8x32xf32> to vector<8x32xbf16>
    %17 = vector.extract_strided_slice %16 {offsets = [0, 0], sizes = [8, 8], strides = [1, 1]} : vector<8x32xbf16> to vector<8x8xbf16>
    %cst_7 = arith.constant 0xFF800000 : f32
    %18 = vector.broadcast %cst_7 : f32 to vector<8x1xf32>
    %cst_8 = arith.constant 0.000000e+00 : f32
    %19 = vector.broadcast %cst_8 : f32 to vector<8x1xf32>
    %cst_9 = arith.constant 0.000000e+00 : f32
    %20 = vector.broadcast %cst_9 : f32 to vector<8x8xf32>
    %c0_10 = arith.constant 0 : index
    %c0_11 = arith.constant 0 : index
    %21 = vector.load %arg8[%c0_10, %c0_11] : memref<8x64xbf16, #tpu.memory_space<vmem>>, vector<8x8xbf16>
    %c0_12 = arith.constant 0 : index
    %c32 = arith.constant 32 : index
    %22 = vector.load %arg8[%c0_12, %c32] : memref<8x64xbf16, #tpu.memory_space<vmem>>, vector<8x8xbf16>
    %cst_13 = arith.constant dense<0.000000e+00> : vector<8x8xf32>
    %23 = tpu.matmul %17, %21, %cst_13 {dimension_numbers = #tpu.dot_dimension_numbers<[1], [1], [0], [0], [0, 0, 1, 0], [], []>} : vector<8x8xbf16>, vector<8x8xbf16>, vector<8x8xf32> -> vector<8x8xf32>
    %cst_14 = arith.constant dense<0xFF800000> : vector<8xf32>
    %24 = vector.multi_reduction <maximumf>, %23, %cst_14 [1] : vector<8x8xf32> to vector<8xf32>
    %25 = vector.shape_cast %24 : vector<8xf32> to vector<8x1xf32>
    %26 = arith.maximumf %18, %25 : vector<8x1xf32>
    %27 = arith.subf %18, %26 : vector<8x1xf32>
    %28 = math.exp %27 : vector<8x1xf32>
    %29 = vector.broadcast %26 : vector<8x1xf32> to vector<8x8xf32>
    %30 = arith.subf %23, %29 : vector<8x8xf32>
    %31 = math.exp %30 : vector<8x8xf32>
    %32 = arith.mulf %28, %19 : vector<8x1xf32>
    %cst_15 = arith.constant dense<0.000000e+00> : vector<8xf32>
    %33 = vector.multi_reduction <add>, %31, %cst_15 [1] : vector<8x8xf32> to vector<8xf32>
    %34 = vector.shape_cast %33 : vector<8xf32> to vector<8x1xf32>
    %35 = arith.addf %32, %34 : vector<8x1xf32>
    %36 = vector.broadcast %28 : vector<8x1xf32> to vector<8x8xf32>
    %37 = arith.mulf %36, %20 : vector<8x8xf32>
    %38 = arith.truncf %31 : vector<8x8xf32> to vector<8x8xbf16>
    %cst_16 = arith.constant dense<0.000000e+00> : vector<8x8xf32>
    %39 = tpu.matmul %38, %22, %cst_16 {dimension_numbers = #tpu.dot_dimension_numbers<[1], [0], [0], [1], [0, 0, 1, 1], [], []>} : vector<8x8xbf16>, vector<8x8xbf16>, vector<8x8xf32> -> vector<8x8xf32>
    %40 = arith.addf %37, %39 : vector<8x8xf32>
    %41 = tpu.reciprocal %35 {approx = true} : vector<8x1xf32> -> vector<8x1xf32>
    %42 = vector.broadcast %41 : vector<8x1xf32> to vector<8x8xf32>
    %43 = arith.mulf %40, %42 : vector<8x8xf32>
    %c0_17 = arith.constant 0 : index
    %c0_18 = arith.constant 0 : index
    %44 = vector.load %arg9[%c0_17, %c0_18] : memref<8x32xf32, #tpu.memory_space<vmem>>, vector<8x8xf32>
    tpu.vector_store %arg9[%c0_17, %c0_18], %43 {strides = array<i32>} : memref<8x32xf32, #tpu.memory_space<vmem>>, vector<8x8xf32>,
    %45 = vector.extract_strided_slice %16 {offsets = [0, 8], sizes = [8, 8], strides = [1, 1]} : vector<8x32xbf16> to vector<8x8xbf16>
    %cst_19 = arith.constant 0xFF800000 : f32
    %46 = vector.broadcast %cst_19 : f32 to vector<8x1xf32>
    %cst_20 = arith.constant 0.000000e+00 : f32
    %47 = vector.broadcast %cst_20 : f32 to vector<8x1xf32>
    %cst_21 = arith.constant 0.000000e+00 : f32
    %48 = vector.broadcast %cst_21 : f32 to vector<8x8xf32>
    %c0_22 = arith.constant 0 : index
    %c8 = arith.constant 8 : index
    %49 = vector.load %arg8[%c0_22, %c8] : memref<8x64xbf16, #tpu.memory_space<vmem>>, vector<8x8xbf16>
    %c0_23 = arith.constant 0 : index
    %c40 = arith.constant 40 : index
    %50 = vector.load %arg8[%c0_23, %c40] : memref<8x64xbf16, #tpu.memory_space<vmem>>, vector<8x8xbf16>
    %cst_24 = arith.constant dense<0.000000e+00> : vector<8x8xf32>
    %51 = tpu.matmul %45, %49, %cst_24 {dimension_numbers = #tpu.dot_dimension_numbers<[1], [1], [0], [0], [0, 0, 1, 0], [], []>} : vector<8x8xbf16>, vector<8x8xbf16>, vector<8x8xf32> -> vector<8x8xf32>
    %cst_25 = arith.constant dense<0xFF800000> : vector<8xf32>
    %52 = vector.multi_reduction <maximumf>, %51, %cst_25 [1] : vector<8x8xf32> to vector<8xf32>
    %53 = vector.shape_cast %52 : vector<8xf32> to vector<8x1xf32>
    %54 = arith.maximumf %46, %53 : vector<8x1xf32>
    %55 = arith.subf %46, %54 : vector<8x1xf32>
    %56 = math.exp %55 : vector<8x1xf32>
    %57 = vector.broadcast %54 : vector<8x1xf32> to vector<8x8xf32>
    %58 = arith.subf %51, %57 : vector<8x8xf32>
    %59 = math.exp %58 : vector<8x8xf32>
    %60 = arith.mulf %56, %47 : vector<8x1xf32>
    %cst_26 = arith.constant dense<0.000000e+00> : vector<8xf32>
    %61 = vector.multi_reduction <add>, %59, %cst_26 [1] : vector<8x8xf32> to vector<8xf32>
    %62 = vector.shape_cast %61 : vector<8xf32> to vector<8x1xf32>
    %63 = arith.addf %60, %62 : vector<8x1xf32>
    %64 = vector.broadcast %56 : vector<8x1xf32> to vector<8x8xf32>
    %65 = arith.mulf %64, %48 : vector<8x8xf32>
    %66 = arith.truncf %59 : vector<8x8xf32> to vector<8x8xbf16>
    %cst_27 = arith.constant dense<0.000000e+00> : vector<8x8xf32>
    %67 = tpu.matmul %66, %50, %cst_27 {dimension_numbers = #tpu.dot_dimension_numbers<[1], [0], [0], [1], [0, 0, 1, 1], [], []>} : vector<8x8xbf16>, vector<8x8xbf16>, vector<8x8xf32> -> vector<8x8xf32>
    %68 = arith.addf %65, %67 : vector<8x8xf32>
    %69 = tpu.reciprocal %63 {approx = true} : vector<8x1xf32> -> vector<8x1xf32>
    %70 = vector.broadcast %69 : vector<8x1xf32> to vector<8x8xf32>
    %71 = arith.mulf %68, %70 : vector<8x8xf32>
    %c0_28 = arith.constant 0 : index
    %c8_29 = arith.constant 8 : index
    %72 = vector.load %arg9[%c0_28, %c8_29] : memref<8x32xf32, #tpu.memory_space<vmem>>, vector<8x8xf32>
    tpu.vector_store %arg9[%c0_28, %c8_29], %71 {strides = array<i32>} : memref<8x32xf32, #tpu.memory_space<vmem>>, vector<8x8xf32>,
    %73 = vector.extract_strided_slice %16 {offsets = [0, 16], sizes = [8, 8], strides = [1, 1]} : vector<8x32xbf16> to vector<8x8xbf16>
    %cst_30 = arith.constant 0xFF800000 : f32
    %74 = vector.broadcast %cst_30 : f32 to vector<8x1xf32>
    %cst_31 = arith.constant 0.000000e+00 : f32
    %75 = vector.broadcast %cst_31 : f32 to vector<8x1xf32>
    %cst_32 = arith.constant 0.000000e+00 : f32
    %76 = vector.broadcast %cst_32 : f32 to vector<8x8xf32>
    %c0_33 = arith.constant 0 : index
    %c16 = arith.constant 16 : index
    %77 = vector.load %arg8[%c0_33, %c16] : memref<8x64xbf16, #tpu.memory_space<vmem>>, vector<8x8xbf16>
    %c0_34 = arith.constant 0 : index
    %c48 = arith.constant 48 : index
    %78 = vector.load %arg8[%c0_34, %c48] : memref<8x64xbf16, #tpu.memory_space<vmem>>, vector<8x8xbf16>
    %cst_35 = arith.constant dense<0.000000e+00> : vector<8x8xf32>
    %79 = tpu.matmul %73, %77, %cst_35 {dimension_numbers = #tpu.dot_dimension_numbers<[1], [1], [0], [0], [0, 0, 1, 0], [], []>} : vector<8x8xbf16>, vector<8x8xbf16>, vector<8x8xf32> -> vector<8x8xf32>
    %cst_36 = arith.constant dense<0xFF800000> : vector<8xf32>
    %80 = vector.multi_reduction <maximumf>, %79, %cst_36 [1] : vector<8x8xf32> to vector<8xf32>
    %81 = vector.shape_cast %80 : vector<8xf32> to vector<8x1xf32>
    %82 = arith.maximumf %74, %81 : vector<8x1xf32>
    %83 = arith.subf %74, %82 : vector<8x1xf32>
    %84 = math.exp %83 : vector<8x1xf32>
    %85 = vector.broadcast %82 : vector<8x1xf32> to vector<8x8xf32>
    %86 = arith.subf %79, %85 : vector<8x8xf32>
    %87 = math.exp %86 : vector<8x8xf32>
    %88 = arith.mulf %84, %75 : vector<8x1xf32>
    %cst_37 = arith.constant dense<0.000000e+00> : vector<8xf32>
    %89 = vector.multi_reduction <add>, %87, %cst_37 [1] : vector<8x8xf32> to vector<8xf32>
    %90 = vector.shape_cast %89 : vector<8xf32> to vector<8x1xf32>
    %91 = arith.addf %88, %90 : vector<8x1xf32>
    %92 = vector.broadcast %84 : vector<8x1xf32> to vector<8x8xf32>
    %93 = arith.mulf %92, %76 : vector<8x8xf32>
    %94 = arith.truncf %87 : vector<8x8xf32> to vector<8x8xbf16>
    %cst_38 = arith.constant dense<0.000000e+00> : vector<8x8xf32>
    %95 = tpu.matmul %94, %78, %cst_38 {dimension_numbers = #tpu.dot_dimension_numbers<[1], [0], [0], [1], [0, 0, 1, 1], [], []>} : vector<8x8xbf16>, vector<8x8xbf16>, vector<8x8xf32> -> vector<8x8xf32>
    %96 = arith.addf %93, %95 : vector<8x8xf32>
    %97 = tpu.reciprocal %91 {approx = true} : vector<8x1xf32> -> vector<8x1xf32>
    %98 = vector.broadcast %97 : vector<8x1xf32> to vector<8x8xf32>
    %99 = arith.mulf %96, %98 : vector<8x8xf32>
    %c0_39 = arith.constant 0 : index
    %c16_40 = arith.constant 16 : index
    %100 = vector.load %arg9[%c0_39, %c16_40] : memref<8x32xf32, #tpu.memory_space<vmem>>, vector<8x8xf32>
    tpu.vector_store %arg9[%c0_39, %c16_40], %99 {strides = array<i32>} : memref<8x32xf32, #tpu.memory_space<vmem>>, vector<8x8xf32>,
    %101 = vector.extract_strided_slice %16 {offsets = [0, 24], sizes = [8, 8], strides = [1, 1]} : vector<8x32xbf16> to vector<8x8xbf16>
    %cst_41 = arith.constant 0xFF800000 : f32
    %102 = vector.broadcast %cst_41 : f32 to vector<8x1xf32>
    %cst_42 = arith.constant 0.000000e+00 : f32
    %103 = vector.broadcast %cst_42 : f32 to vector<8x1xf32>
    %cst_43 = arith.constant 0.000000e+00 : f32
    %104 = vector.broadcast %cst_43 : f32 to vector<8x8xf32>
    %c0_44 = arith.constant 0 : index
    %c24 = arith.constant 24 : index
    %105 = vector.load %arg8[%c0_44, %c24] : memref<8x64xbf16, #tpu.memory_space<vmem>>, vector<8x8xbf16>
    %c0_45 = arith.constant 0 : index
    %c56 = arith.constant 56 : index
    %106 = vector.load %arg8[%c0_45, %c56] : memref<8x64xbf16, #tpu.memory_space<vmem>>, vector<8x8xbf16>
    %cst_46 = arith.constant dense<0.000000e+00> : vector<8x8xf32>
    %107 = tpu.matmul %101, %105, %cst_46 {dimension_numbers = #tpu.dot_dimension_numbers<[1], [1], [0], [0], [0, 0, 1, 0], [], []>} : vector<8x8xbf16>, vector<8x8xbf16>, vector<8x8xf32> -> vector<8x8xf32>
    %cst_47 = arith.constant dense<0xFF800000> : vector<8xf32>
    %108 = vector.multi_reduction <maximumf>, %107, %cst_47 [1] : vector<8x8xf32> to vector<8xf32>
    %109 = vector.shape_cast %108 : vector<8xf32> to vector<8x1xf32>
    %110 = arith.maximumf %102, %109 : vector<8x1xf32>
    %111 = arith.subf %102, %110 : vector<8x1xf32>
    %112 = math.exp %111 : vector<8x1xf32>
    %113 = vector.broadcast %110 : vector<8x1xf32> to vector<8x8xf32>
    %114 = arith.subf %107, %113 : vector<8x8xf32>
    %115 = math.exp %114 : vector<8x8xf32>
    %116 = arith.mulf %112, %103 : vector<8x1xf32>
    %cst_48 = arith.constant dense<0.000000e+00> : vector<8xf32>
    %117 = vector.multi_reduction <add>, %115, %cst_48 [1] : vector<8x8xf32> to vector<8xf32>
    %118 = vector.shape_cast %117 : vector<8xf32> to vector<8x1xf32>
    %119 = arith.addf %116, %118 : vector<8x1xf32>
    %120 = vector.broadcast %112 : vector<8x1xf32> to vector<8x8xf32>
    %121 = arith.mulf %120, %104 : vector<8x8xf32>
    %122 = arith.truncf %115 : vector<8x8xf32> to vector<8x8xbf16>
    %cst_49 = arith.constant dense<0.000000e+00> : vector<8x8xf32>
    %123 = tpu.matmul %122, %106, %cst_49 {dimension_numbers = #tpu.dot_dimension_numbers<[1], [0], [0], [1], [0, 0, 1, 1], [], []>} : vector<8x8xbf16>, vector<8x8xbf16>, vector<8x8xf32> -> vector<8x8xf32>
    %124 = arith.addf %121, %123 : vector<8x8xf32>
    %125 = tpu.reciprocal %119 {approx = true} : vector<8x1xf32> -> vector<8x1xf32>
    %126 = vector.broadcast %125 : vector<8x1xf32> to vector<8x8xf32>
    %127 = arith.mulf %124, %126 : vector<8x8xf32>
    %c0_50 = arith.constant 0 : index
    %c24_51 = arith.constant 24 : index
    %128 = vector.load %arg9[%c0_50, %c24_51] : memref<8x32xf32, #tpu.memory_space<vmem>>, vector<8x8xf32>
    tpu.vector_store %arg9[%c0_50, %c24_51], %127 {strides = array<i32>} : memref<8x32xf32, #tpu.memory_space<vmem>>, vector<8x8xf32>,
    %c0_52 = arith.constant 0 : index
    %c0_53 = arith.constant 0 : index
    %129 = vector.load %arg9[%c0_52, %c0_53] : memref<8x32xf32, #tpu.memory_space<vmem>>, vector<8x32xf32>
    %c0_54 = arith.constant 0 : index
    %c0_55 = arith.constant 0 : index
    %c0_56 = arith.constant 0 : index
    %130 = vector.load %arg7[%c0_54, %c0_55, %c0_56] : memref<1x8x32xf32, #tpu.memory_space<vmem>>, vector<1x8x32xf32>
    %131 = vector.shape_cast %130 : vector<1x8x32xf32> to vector<8x32xf32>
    %132 = vector.shape_cast %129 : vector<8x32xf32> to vector<1x8x32xf32>
    tpu.vector_store %arg7[%c0_54, %c0_55, %c0_56], %132 {strides = array<i32>} : memref<1x8x32xf32, #tpu.memory_space<vmem>>, vector<1x8x32xf32>,
    return
  }
  func.func @transform_0(%arg0: i32, %arg1: i32) -> (i32, i32, i32) {
    %c0_i32 = arith.constant 0 : i32
    %c0_i32_0 = arith.constant 0 : i32
    %c0_i32_1 = arith.constant 0 : i32
    return %arg0, %c0_i32, %c0_i32_0 : i32, i32, i32
  }
  func.func @transform_1(%arg0: i32, %arg1: i32) -> (i32, i32) {
    %c0_i32 = arith.constant 0 : i32
    %c0_i32_0 = arith.constant 0 : i32
    %c0_i32_1 = arith.constant 0 : i32
    return %c0_i32, %c0_i32_0 : i32, i32
  }
  func.func @transform_2(%arg0: i32, %arg1: i32) -> (i32, i32) {
    %c0_i32 = arith.constant 0 : i32
    %c0_i32_0 = arith.constant 0 : i32
    %c0_i32_1 = arith.constant 0 : i32
    return %c0_i32, %c0_i32_0 : i32, i32
  }
  func.func @transform_3(%arg0: i32, %arg1: i32) -> (i32, i32) {
    %c0_i32 = arith.constant 0 : i32
    %c0_i32_0 = arith.constant 0 : i32
    %c0_i32_1 = arith.constant 0 : i32
    return %c0_i32, %c0_i32_0 : i32, i32
  }
  func.func @transform_4(%arg0: i32, %arg1: i32) -> (i32, i32) {
    %c0_i32 = arith.constant 0 : i32
    %c0_i32_0 = arith.constant 0 : i32
    %c0_i32_1 = arith.constant 0 : i32
    return %c0_i32, %c0_i32_0 : i32, i32
  }
  func.func @transform_5(%arg0: i32, %arg1: i32) -> (i32, i32, i32) {
    %c0_i32 = arith.constant 0 : i32
    %c0_i32_0 = arith.constant 0 : i32
    return %arg0, %arg1, %c0_i32 : i32, i32, i32
  }
}

</mosaic_0001>

<llo_original>
// kernel: tpu_custom_call.1
$region0: #{tpu_custom_call.1}
  #allocation0 [shape = 'u32[]', space=smem, size = 0x4, offset = 0x4, fixed_abs, tag = 'smem constant byte address 0x4 - core index']
  #allocation1 [shape = 'u32[144,128]{1,0:T(1,128)}', space=vmem, size = 0x12000, scoped, tag = 'internal scratch']
  #allocation2 [shape = 'bf16[8,64]{1,0:T(8,128)(2,1)}', space=vmem, size = 0x800, scoped, tag = 'scratch operand']
  #allocation3 [shape = 'f32[8,32]{1,0:T(8,128)}', space=vmem, size = 0x1000, scoped, tag = 'scratch operand']
  %s0 = inlined_call_operand.hbm [shape: f32[2,8,32], index: 0, kind: input, shape index: {}]
  %s1 = inlined_call_operand.hbm [shape: bf16[32,32], index: 1, kind: input, shape index: {}]
  %s2 = inlined_call_operand.hbm [shape: bf16[32,64], index: 2, kind: input, shape index: {}]
  %s3 = inlined_call_operand.vmem [shape: f32[1,32], index: 3, kind: input, shape index: {}]
  %s4 = inlined_call_operand.vmem [shape: f32[1,64], index: 4, kind: input, shape index: {}]
  %s5 = inlined_call_operand.hbm [shape: f32[2,8,32], index: 5, kind: output, shape index: {}]
  %s6 = sld [smem:[#allocation0]]
  $region69: #{tpu_custom_call.1} parent=0
    _
  %s8 = ssub.s32 1, %s6
  %s9 = scalar_select 0, %s8, %s6
  $region1: #{tpu_custom_call.1} parent=0
    #allocation4 [shape = 'u8[8192]{0}', space=vmem, size = 0x2000, scoped, tag = 'input window, operand 0']
    #allocation5 [shape = 's32[2]{0}', space=sflag, size = 0x8, scoped, tag = 'scoped memory for tpu_custom_call.1']
    #allocation6 [shape = 's32[2]{0}', space=sflag, size = 0x8, scoped, tag = 'scoped memory for tpu_custom_call.1']
    #allocation7 [shape = 'u8[8192]{0}', space=vmem, size = 0x2000, scoped, tag = 'input window, operand 1, single buffered']
    #allocation8 [shape = 's32[1]{0}', space=sflag, size = 0x4, scoped, tag = 'scoped memory for tpu_custom_call.1']
    #allocation9 [shape = 'u8[8192]{0}', space=vmem, size = 0x2000, scoped, tag = 'input window, operand 2, single buffered']
    #allocation10 [shape = 'u8[8192]{0}', space=vmem, size = 0x2000, scoped, tag = 'output window, operand 0']
    %10 = vsyncpa [#allocation5], 0
    %s11 = scalar_lea.sflag [#allocation5], 1
    %12 = vsyncpa %s11, 0
    %13 = vsyncpa [#allocation8], 0
    %14 = vsyncpa [#allocation6], 0
    %s15 = scalar_lea.sflag [#allocation6], 1
    %16 = vsyncpa %s15, 0
    loop: start=0, step=1, limit=4
    $region2: #{tpu_custom_call.1} parent=1 // loop_pre_header
      _
    $region3: #{tpu_custom_call.1} parent=1 // loop_header
      %s18 = sphi 0, %s22
      %p19 = scmp.ge.s32.totalorder %s18, 4
      %s25 = sphi 0, %s37
      %s26 = sphi 0, %s33
      %s27 = sphi 0, %s25
      %s28 = sphi 0, %s26
      %s29 = sphi 0, %s27
      %s30 = sphi 0, %s28
      %s40 = sphi 0, %s42
      %s43 = sphi 0, %s40
      %s44 = sphi 0, %s43
      %s60 = sphi 0, %s44
      %s64 = sphi 0, %s64
      %s66 = sphi 0, %s64
      %s67 = sphi 0, %s66
      %s81 = sphi 0, %s67
      %s85 = sphi 0, %s85
      %s87 = sphi 0, %s85
      %s88 = sphi 0, %s87
      %s102 = sphi 0, %s88
      %s106 = sphi 0, %s106
      %s108 = sphi 0, %s106
      %s109 = sphi 0, %s108
      %s123 = sphi 0, %s109
      %s127 = sphi 0, %s127
      %s129 = sphi 0, %s127
      %s130 = sphi 0, %s129
      %s144 = sphi 0, %s130
      %s152 = sphi 0, %s154
      %s155 = sphi 0, %s152
      %s156 = sphi 0, %s155
      %s172 = sphi 0, %s156
    $region4: #{tpu_custom_call.1} parent=1 // loop_header_branch
      %21 = sbr.rel (%p19) target = $region8
    $region5: #{tpu_custom_call.1} parent=1 // loop_body
      %s23 = ssub.s32 %s18, 1
      %s24 = ssub.s32 %s18, 2
      %s31 = sadd.s32 1, %s26
      %p32 = scmp.ge.s32.totalorder %s31, 1
      %s33 = scalar_select %p32, 0, %s31
      %s34 = sadd.s32 1, %s25
      %s35 = scalar_select %p32, %s34, %s25
      %p36 = scmp.ge.s32.totalorder %s35, 2
      %s37 = scalar_select %p36, 0, %s35
      %s38 = ssub.s32 %s25, %s37
      %p39 = scmp.eq.s32.totalorder %s38, 0
      %s41 = sadd.s32 %s40, 1
      %s42 = scalar_select %p39, %s40, %s41
      %p45 = pneg %p39
      %p46 = scmp.eq.s32.totalorder %s18, 1
      %p47 = por %p45, %p46
      %p48 = scmp.ne.s32.totalorder %s40, %s43
      %p49 = scmp.eq.s32.totalorder %s18, 0
      %p50 = por %p48, %p49
      %p51 = scmp.ne.s32.totalorder %s40, %s43
      %p52 = scmp.eq.s32.totalorder %s23, 1
      %p53 = por %p51, %p52
      %p54 = scmp.ne.s32.totalorder %s43, %s44
      %p55 = scmp.eq.s32.totalorder %s23, 0
      %p56 = por %p54, %p55
      %p57 = scmp.ne.s32.totalorder %s43, %s44
      %p58 = scmp.eq.s32.totalorder %s24, 1
      %p59 = por %p57, %p58
      %p61 = scmp.ne.s32.totalorder %s44, %s60
      %p62 = scmp.eq.s32.totalorder %s24, 0
      %p63 = por %p61, %p62
      %s65 = sadd.s32 %s64, 1
      %p68 = scmp.eq.s32.totalorder %s18, 1
      %p69 = scmp.ne.s32.totalorder %s64, %s66
      %p70 = scmp.eq.s32.totalorder %s18, 0
      %p71 = por %p69, %p70
      %p72 = scmp.ne.s32.totalorder %s64, %s66
      %p73 = scmp.eq.s32.totalorder %s23, 1
      %p74 = por %p72, %p73
      %p75 = scmp.ne.s32.totalorder %s66, %s67
      %p76 = scmp.eq.s32.totalorder %s23, 0
      %p77 = por %p75, %p76
      %p78 = scmp.ne.s32.totalorder %s66, %s67
      %p79 = scmp.eq.s32.totalorder %s24, 1
      %p80 = por %p78, %p79
      %p82 = scmp.ne.s32.totalorder %s67, %s81
      %p83 = scmp.eq.s32.totalorder %s24, 0
      %p84 = por %p82, %p83
      %s86 = sadd.s32 %s85, 1
      %p89 = scmp.eq.s32.totalorder %s18, 1
      %p90 = scmp.ne.s32.totalorder %s85, %s87
      %p91 = scmp.eq.s32.totalorder %s18, 0
      %p92 = por %p90, %p91
      %p93 = scmp.ne.s32.totalorder %s85, %s87
      %p94 = scmp.eq.s32.totalorder %s23, 1
      %p95 = por %p93, %p94
      %p96 = scmp.ne.s32.totalorder %s87, %s88
      %p97 = scmp.eq.s32.totalorder %s23, 0
      %p98 = por %p96, %p97
      %p99 = scmp.ne.s32.totalorder %s87, %s88
      %p100 = scmp.eq.s32.totalorder %s24, 1
      %p101 = por %p99, %p100
      %p103 = scmp.ne.s32.totalorder %s88, %s102
      %p104 = scmp.eq.s32.totalorder %s24, 0
      %p105 = por %p103, %p104
      %s107 = sadd.s32 %s106, 1
      %p110 = scmp.eq.s32.totalorder %s18, 1
      %p111 = scmp.ne.s32.totalorder %s106, %s108
      %p112 = scmp.eq.s32.totalorder %s18, 0
      %p113 = por %p111, %p112
      %p114 = scmp.ne.s32.totalorder %s106, %s108
      %p115 = scmp.eq.s32.totalorder %s23, 1
      %p116 = por %p114, %p115
      %p117 = scmp.ne.s32.totalorder %s108, %s109
      %p118 = scmp.eq.s32.totalorder %s23, 0
      %p119 = por %p117, %p118
      %p120 = scmp.ne.s32.totalorder %s108, %s109
      %p121 = scmp.eq.s32.totalorder %s24, 1
      %p122 = por %p120, %p121
      %p124 = scmp.ne.s32.totalorder %s109, %s123
      %p125 = scmp.eq.s32.totalorder %s24, 0
      %p126 = por %p124, %p125
      %s128 = sadd.s32 %s127, 1
      %p131 = scmp.eq.s32.totalorder %s18, 1
      %p132 = scmp.ne.s32.totalorder %s127, %s129
      %p133 = scmp.eq.s32.totalorder %s18, 0
      %p134 = por %p132, %p133
      %p135 = scmp.ne.s32.totalorder %s127, %s129
      %p136 = scmp.eq.s32.totalorder %s23, 1
      %p137 = por %p135, %p136
      %p138 = scmp.ne.s32.totalorder %s129, %s130
      %p139 = scmp.eq.s32.totalorder %s23, 0
      %p140 = por %p138, %p139
      %p141 = scmp.ne.s32.totalorder %s129, %s130
      %p142 = scmp.eq.s32.totalorder %s24, 1
      %p143 = por %p141, %p142
      %p145 = scmp.ne.s32.totalorder %s130, %s144
      %p146 = scmp.eq.s32.totalorder %s24, 0
      %p147 = por %p145, %p146
      %s148 = ssub.s32 %s25, %s37
      %s149 = ssub.s32 %s26, %s33
      %s150 = sor.u32 %s148, %s149
      %p151 = scmp.eq.s32.totalorder %s150, 0
      %s153 = sadd.s32 %s152, 1
      %s154 = scalar_select %p151, %s152, %s153
      %p157 = pneg %p151
      %p158 = scmp.eq.s32.totalorder %s18, 1
      %p159 = por %p157, %p158
      %p160 = scmp.ne.s32.totalorder %s152, %s155
      %p161 = scmp.eq.s32.totalorder %s18, 0
      %p162 = por %p160, %p161
      %p163 = scmp.ne.s32.totalorder %s152, %s155
      %p164 = scmp.eq.s32.totalorder %s23, 1
      %p165 = por %p163, %p164
      %p166 = scmp.ne.s32.totalorder %s155, %s156
      %p167 = scmp.eq.s32.totalorder %s23, 0
      %p168 = por %p166, %p167
      %p169 = scmp.ne.s32.totalorder %s155, %s156
      %p170 = scmp.eq.s32.totalorder %s24, 1
      %p171 = por %p169, %p170
      %p173 = scmp.ne.s32.totalorder %s156, %s172
      %p174 = scmp.eq.s32.totalorder %s24, 0
      %p175 = por %p173, %p174
      %p176 = scmp.le.s32.totalorder 1, %s18
      %p177 = scmp.lt.s32.totalorder %s18, 3
      %p178 = pnand %p176, %p177
      %p179 = pneg %p178
      // Predicated region
      $region9: #{tpu_custom_call.1} parent=5 // pred_check
        _
      $region10: #{tpu_custom_call.1} parent=5 // pred_check_branch
        %181 = sbr.rel (%p178) target = $region12
      $region11: #{tpu_custom_call.1} parent=5 // pred_region
        %s182 = ssub.s32 %s18, 1
        // Predicated region
        $region13: #{tpu_custom_call.1} parent=11 // pred_check
          %p183 = pneg %p77
        $region14: #{tpu_custom_call.1} parent=11 // pred_check_branch
          %185 = sbr.rel (%p183) target = $region16
        $region15: #{tpu_custom_call.1} parent=11 // pred_region
          %s187 = ssub.s32 256, 256
          %188 = vsyncadd [#allocation8], %s187
          %s189 = sshll.u32 [#allocation7], 4
          %s190 = int_to_ptr.vmem [resolvable:$true] %s189
          %195 = dma.hbm_to_vmem [thread:$0]  %s1, 256, %s190, [#allocation8], 64, 64, 4
        $region16: #{tpu_custom_call.1} parent=11 // pred_fallthru
          _
        // Predicated region
        $region17: #{tpu_custom_call.1} parent=11 // pred_check
          %p196 = pneg %p98
        $region18: #{tpu_custom_call.1} parent=11 // pred_check_branch
          %198 = sbr.rel (%p196) target = $region20
        $region19: #{tpu_custom_call.1} parent=11 // pred_region
          %s200 = ssub.s32 256, 256
          %201 = vsyncadd [#allocation8], %s200
          %s202 = sshll.u32 [#allocation9], 4
          %s203 = int_to_ptr.vmem [resolvable:$true] %s202
          %208 = dma.hbm_to_vmem [thread:$0]  %s2, 256, %s203, [#allocation8], 64, 64, 4
        $region20: #{tpu_custom_call.1} parent=11 // pred_fallthru
          _
        // Predicated region
        $region21: #{tpu_custom_call.1} parent=11 // pred_check
          %p209 = pneg %p119
        $region22: #{tpu_custom_call.1} parent=11 // pred_check_branch
          %211 = sbr.rel (%p209) target = $region24
        $region23: #{tpu_custom_call.1} parent=11 // pred_region
          _
        $region24: #{tpu_custom_call.1} parent=11 // pred_fallthru
          _
        // Predicated region
        $region25: #{tpu_custom_call.1} parent=11 // pred_check
          %p212 = pneg %p140
        $region26: #{tpu_custom_call.1} parent=11 // pred_check_branch
          %214 = sbr.rel (%p212) target = $region28
        $region27: #{tpu_custom_call.1} parent=11 // pred_region
          _
        $region28: #{tpu_custom_call.1} parent=11 // pred_fallthru
          _
      $region12: #{tpu_custom_call.1} parent=5 // pred_fallthru
        _
      %p215 = scmp.lt.s32.totalorder %s18, 2
      // Predicated region
      $region29: #{tpu_custom_call.1} parent=5 // pred_check
        %p216 = pneg %p215
      $region30: #{tpu_custom_call.1} parent=5 // pred_check_branch
        %218 = sbr.rel (%p216) target = $region32
      $region31: #{tpu_custom_call.1} parent=5 // pred_region
        // Predicated region
        $region33: #{tpu_custom_call.1} parent=31 // pred_check
          %p219 = pneg %p50
        $region34: #{tpu_custom_call.1} parent=31 // pred_check_branch
          %221 = sbr.rel (%p219) target = $region36
        $region35: #{tpu_custom_call.1} parent=31 // pred_region
          %s222 = sand.u32 %s40, 1
          %s223 = scalar_lea.sflag [#allocation5], %s222
          %s224 = sand.u32 %s40, 1
          %s225 = smul.addr %s224, 8
          %s226 = scalar_lea.vmem [#allocation4], %s225
          %s228 = ssub.s32 128, 128
          %229 = vsyncadd %s223, %s228
          %s230 = smul.addr %s25, 128
          %s231 = scalar_lea.hbm %s0, %s230
          %s233 = sshll.u32 %s226, 4
          %s234 = int_to_ptr.vmem [resolvable:$true] %s233
          %236 = dma.hbm_to_vmem [thread:$0]  %s231, 128, %s234, %s223
        $region36: #{tpu_custom_call.1} parent=31 // pred_fallthru
          _
      $region32: #{tpu_custom_call.1} parent=5 // pred_fallthru
        _
      %p237 = scmp.le.s32.totalorder 1, %s18
      %p238 = scmp.lt.s32.totalorder %s18, 3
      %p239 = pnand %p237, %p238
      %p240 = pneg %p239
      // Predicated region
      $region37: #{tpu_custom_call.1} parent=5 // pred_check
        _
      $region38: #{tpu_custom_call.1} parent=5 // pred_check_branch
        %242 = sbr.rel (%p239) target = $region40
      $region39: #{tpu_custom_call.1} parent=5 // pred_region
        %s243 = ssub.s32 %s18, 1
        %s244 = sand.u32 %s43, 1
        %s245 = scalar_lea.sflag [#allocation5], %s244
        %s246 = sand.u32 %s43, 1
        %s247 = smul.addr %s246, 8
        %s248 = scalar_lea.vmem [#allocation4], %s247
        // Predicated region
        $region41: #{tpu_custom_call.1} parent=39 // pred_check
          %p249 = pneg %p56
        $region42: #{tpu_custom_call.1} parent=39 // pred_check_branch
          %251 = sbr.rel (%p249) target = $region44
        $region43: #{tpu_custom_call.1} parent=39 // pred_region
          %252 = dma.done %s245, 128
        $region44: #{tpu_custom_call.1} parent=39 // pred_fallthru
          _
        // Predicated region
        $region45: #{tpu_custom_call.1} parent=39 // pred_check
          %p253 = pneg %p77
        $region46: #{tpu_custom_call.1} parent=39 // pred_check_branch
          %255 = sbr.rel (%p253) target = $region48
        $region47: #{tpu_custom_call.1} parent=39 // pred_region
          %256 = dma.done [#allocation8], 256
        $region48: #{tpu_custom_call.1} parent=39 // pred_fallthru
          _
        // Predicated region
        $region49: #{tpu_custom_call.1} parent=39 // pred_check
          %p257 = pneg %p98
        $region50: #{tpu_custom_call.1} parent=39 // pred_check_branch
          %259 = sbr.rel (%p257) target = $region52
        $region51: #{tpu_custom_call.1} parent=39 // pred_region
          %260 = dma.done [#allocation8], 256
        $region52: #{tpu_custom_call.1} parent=39 // pred_fallthru
          _
        %s261 = sand.u32 %s43, 1
        %s262 = scalar_lea.sflag [#allocation5], %s261
        %s263 = sand.u32 %s43, 1
        %s264 = smul.addr %s263, 8
        %s265 = scalar_lea.vmem [#allocation4], %s264
        %p266 = pneg %p56
        %p267 = pneg %p53
        %p268 = pneg %p77
        %p269 = pneg %p74
        %p270 = pneg %p98
        %p271 = pneg %p95
        %p272 = pneg %p119
        %p273 = pneg %p116
        %p274 = pneg %p140
        %p275 = pneg %p137
        %p276 = pneg %p168
        %p277 = pneg %p165
        %s278 = sand.u32 %s155, 1
        %s279 = scalar_lea.sflag [#allocation6], %s278
        %s280 = sand.u32 %s155, 1
        %s281 = smul.addr %s280, 8
        %s282 = scalar_lea.vmem [#allocation10], %s281
        %p284 = scmp.eq.s32.totalorder %s28, 0
        // Predicated region
        $region53: #{tpu_custom_call.1} parent=39 // pred_check
          %p285 = pneg %p284
        $region54: #{tpu_custom_call.1} parent=39 // pred_check_branch
          %287 = sbr.rel (%p285) target = $region56
        $region55: #{tpu_custom_call.1} parent=39 // pred_region
          %v288 = vld [vmem:[%s248] sm:$0xff]
          %v289 = vpack.c.bf16 %v288, %v288
          %v290 = vld [vmem:[#allocation9] sm:$0xf]
          %v291 = vld [vmem:[#allocation9 + $0x4] sm:$0xf]
          %v292 = vld [vmem:[#allocation9 + $0x8] sm:$0xf]
          %v293 = vld [vmem:[#allocation9 + $0xc] sm:$0xf]
          %v294 = vld [vmem:[%s4] sm:$0x1]
          %v296 = vlaneseq
          %v297 = vshrl.u32 %v296, 7
          %v298 = vsub.s32 0, %v297
          %v299 = vrot.slane %v294, %v298
          %v305 = vunpack.c.l.b16 %v290
          %v306 = vunpack.c.l.b16 %v291
          %v307 = vunpack.c.l.b16 %v292
          %v308 = vunpack.c.l.b16 %v293
          %v309 = vpack.c.b16 %v306, %v305
          %v310 = vpack.c.b16 %v308, %v307
          %vm313 = vcmask 261120
          %v315 = vsel %vm313, %v289, 0
          %317 = vmatprep.subr.bf16.mxu0 0
          %318 = vmatpush1.bf16.msra.mxu0 0
          %319 = vmatprep.subr.bf16.mxu0 0
          %320 = vmatpush1.bf16.msra.mxu0 0
          %321 = vmatprep.subr.bf16.mxu0 0
          %322 = vmatpush1.bf16.msra.mxu0 0
          %323 = vmatprep.subr.bf16.mxu0 0
          %324 = vmatpush1.bf16.msra.mxu0 0
          %325 = vmatprep.subr.bf16.mxu0 0
          %326 = vmatpush1.bf16.msra.mxu0 0
          %327 = vmatprep.subr.bf16.mxu0 0
          %328 = vmatpush1.bf16.msra.mxu0 0
          %329 = vmatprep.subr.bf16.mxu0 0
          %330 = vmatpush1.bf16.msra.mxu0 %v310
          %331 = vmatprep.subr.bf16.mxu0 0
          %332 = vmatpush1.bf16.msra.mxu0 %v309
          %333 = vmatprep.subr.bf16.mxu0 0
          %334 = vmatpush2.bf16.msra.mxu0 0
          %335 = vmatprep.subr.bf16.mxu0 0
          %336 = vmatpush2.bf16.msra.mxu0 0
          %337 = vmatprep.subr.bf16.mxu0 0
          %338 = vmatpush2.bf16.msra.mxu0 0
          %339 = vmatprep.subr.bf16.mxu0 0
          %340 = vmatpush2.bf16.msra.mxu0 0
          %341 = vmatprep.subr.bf16.mxu0 0
          %342 = vmatpush2.bf16.msra.mxu0 0
          %343 = vmatprep.subr.bf16.mxu0 0
          %344 = vmatpush2.bf16.msra.mxu0 0
          %345 = vmatprep.subr.bf16.mxu0 0
          %346 = vmatpush2.bf16.msra.mxu0 0
          %347 = vmatprep.subr.bf16.mxu0 0
          %348 = vmatpush2.bf16.msra.mxu0 0
          %349 = vmatprep.mubr.bf16.mxu0 0
          %350 = vmatmul.mubr.bf16.gmra.mxu0 %v315
          %v351 = vpop.f32.mrf.mxu0
          %v352 = vadd.f32 %v299, %v351
          %v353 = vpop.f32.mrf.mxu0
          %v354 = vpop.f32.mrf.mxu0
          %v355 = vpop.f32.mrf.mxu0
          %356 = vdwg.mxu0
          %v357 = vpack.c.bf16 %v352, %v352
          %vm358 = vcmask 519168
          %359 = vst.msk [vmem:[#allocation2] sm:$0xf] %vm358, %v357
        $region56: #{tpu_custom_call.1} parent=39 // pred_fallthru
          _
        %s360 = smul.u32 %s28, 8
        %s361 = scalar_lea.vmem %s248, %s360 [#allocation4]
        %v362 = vld [vmem:[%s361] sm:$0xff]
        %v363 = vpack.c.bf16 %v362, %v362
        %v364 = vld [vmem:[#allocation7] sm:$0xf]
        %v365 = vld [vmem:[#allocation7 + $0x4] sm:$0xf]
        %v366 = vld [vmem:[#allocation7 + $0x8] sm:$0xf]
        %v367 = vld [vmem:[#allocation7 + $0xc] sm:$0xf]
        %v368 = vld [vmem:[%s3] sm:$0x1]
        %v370 = vlaneseq
        %v371 = vshrl.u32 %v370, 7
        %v372 = vsub.s32 0, %v371
        %v373 = vrot.slane %v368, %v372
        %v379 = vunpack.c.l.b16 %v364
        %v380 = vunpack.c.l.b16 %v365
        %v381 = vunpack.c.l.b16 %v366
        %v382 = vunpack.c.l.b16 %v367
        %v383 = vpack.c.b16 %v380, %v379
        %v384 = vpack.c.b16 %v382, %v381
        %vm387 = vcmask 261120
        %v389 = vsel %vm387, %v363, 0
        %391 = vmatprep.subr.bf16.mxu0 0
        %392 = vmatpush1.bf16.msra.mxu0 0
        %393 = vmatprep.subr.bf16.mxu0 0
        %394 = vmatpush1.bf16.msra.mxu0 0
        %395 = vmatprep.subr.bf16.mxu0 0
        %396 = vmatpush1.bf16.msra.mxu0 0
        %397 = vmatprep.subr.bf16.mxu0 0
        %398 = vmatpush1.bf16.msra.mxu0 0
        %399 = vmatprep.subr.bf16.mxu0 0
        %400 = vmatpush1.bf16.msra.mxu0 0
        %401 = vmatprep.subr.bf16.mxu0 0
        %402 = vmatpush1.bf16.msra.mxu0 0
        %403 = vmatprep.subr.bf16.mxu0 0
        %404 = vmatpush1.bf16.msra.mxu0 %v384
        %405 = vmatprep.subr.bf16.mxu0 0
        %406 = vmatpush1.bf16.msra.mxu0 %v383
        %407 = vmatprep.subr.bf16.mxu0 0
        %408 = vmatpush2.bf16.msra.mxu0 0
        %409 = vmatprep.subr.bf16.mxu0 0
        %410 = vmatpush2.bf16.msra.mxu0 0
        %411 = vmatprep.subr.bf16.mxu0 0
        %412 = vmatpush2.bf16.msra.mxu0 0
        %413 = vmatprep.subr.bf16.mxu0 0
        %414 = vmatpush2.bf16.msra.mxu0 0
        %415 = vmatprep.subr.bf16.mxu0 0
        %416 = vmatpush2.bf16.msra.mxu0 0
        %417 = vmatprep.subr.bf16.mxu0 0
        %418 = vmatpush2.bf16.msra.mxu0 0
        %419 = vmatprep.subr.bf16.mxu0 0
        %420 = vmatpush2.bf16.msra.mxu0 0
        %421 = vmatprep.subr.bf16.mxu0 0
        %422 = vmatpush2.bf16.msra.mxu0 0
        %423 = vmatprep.mubr.bf16.mxu0 0
        %424 = vmatmul.mubr.bf16.gmra.mxu0 %v389
        %v425 = vpop.f32.mrf.mxu0
        %v426 = vadd.f32 %v373, %v425
        %v427 = vpop.f32.mrf.mxu0
        %v428 = vpop.f32.mrf.mxu0
        %v429 = vpop.f32.mrf.mxu0
        %430 = vdwg.mxu0
        %v431 = vmul.f32 %v426, 0.35355338
        %v432 = vpack.c.bf16 %v431, %v431
        %v433 = vld [vmem:[#allocation2] sm:$0xf]
        %vm434 = vcmask 64512
        %v436 = vsel %vm434, %v432, 0
        %v439 = vsel %vm434, %v433, 0
        %441 = vmatprep.subr.bf16.mxu0 0
        %442 = vmatpush1.bf16.xpose.msra.mxu0 0
        %443 = vmatprep.subr.bf16.mxu0 0
        %444 = vmatpush1.bf16.xpose.msra.mxu0 0
        %445 = vmatprep.subr.bf16.mxu0 0
        %446 = vmatpush1.bf16.xpose.msra.mxu0 0
        %447 = vmatprep.subr.bf16.mxu0 0
        %448 = vmatpush1.bf16.xpose.msra.mxu0 0
        %449 = vmatprep.subr.bf16.mxu0 0
        %450 = vmatpush1.bf16.xpose.msra.mxu0 0
        %451 = vmatprep.subr.bf16.mxu0 0
        %452 = vmatpush1.bf16.xpose.msra.mxu0 0
        %453 = vmatprep.subr.bf16.mxu0 0
        %454 = vmatpush1.bf16.xpose.msra.mxu0 0
        %455 = vmatprep.subr.bf16.mxu0 0
        %456 = vmatpush1.bf16.xpose.msra.mxu0 %v439
        %457 = vmatprep.subr.bf16.mxu0 0
        %458 = vmatpush2.bf16.xpose.msra.mxu0 0
        %459 = vmatprep.subr.bf16.mxu0 0
        %460 = vmatpush2.bf16.xpose.msra.mxu0 0
        %461 = vmatprep.subr.bf16.mxu0 0
        %462 = vmatpush2.bf16.xpose.msra.mxu0 0
        %463 = vmatprep.subr.bf16.mxu0 0
        %464 = vmatpush2.bf16.xpose.msra.mxu0 0
        %465 = vmatprep.subr.bf16.mxu0 0
        %466 = vmatpush2.bf16.xpose.msra.mxu0 0
        %467 = vmatprep.subr.bf16.mxu0 0
        %468 = vmatpush2.bf16.xpose.msra.mxu0 0
        %469 = vmatprep.subr.bf16.mxu0 0
        %470 = vmatpush2.bf16.xpose.msra.mxu0 0
        %471 = vmatprep.subr.bf16.mxu0 0
        %472 = vmatpush2.bf16.xpose.msra.mxu0 0
        %473 = vmatprep.mubr.bf16.mxu0 0
        %474 = vmatmul.mubr.bf16.gmra.mxu0 %v436
        %v475 = vpop.f32.mrf.mxu0
        %v476 = vadd.f32 0.0, %v475
        %v477 = vpop.f32.mrf.mxu0
        %v478 = vpop.f32.mrf.mxu0
        %v479 = vpop.f32.mrf.mxu0
        %480 = vdwg.mxu0
        %v481 = vsel %vm434, %v476, -inf
        %482 = vmax.xlane.f32.xlu0 %v481
        %v483 = vpop.xlane.xlu0 %482
        %v484 = vsub.f32 -inf, %v483
        %v485 = vmul.f32 %v484, 1.442695
        %v486 = vpow.pop %v485
        %v487 = vsub.f32 %v476, %v483
        %v488 = vmul.f32 %v487, 1.442695
        %v489 = vpow.pop %v488
        %v490 = vmul.f32 %v486, 0.0
        %v491 = vsel %vm434, %v489, 0.0
        %492 = vadd.xlane.f32.xlu0 %v491
        %v493 = vpop.xlane.xlu0 %492
        %v494 = vadd.f32 %v490, %v493
        %v495 = vpack.c.bf16 %v489, %v489
        %v497 = vunpack.c.l.b16 %v433
        %v498 = vpack.c.b16 %v497, %v497
        %499 = vrot.lane.b32.xlu0 %v498, 96
        %v500 = vpop.permute.xlu0 %499
        %v502 = vsel %vm434, %v495, 0
        %vm504 = vcmask 1043456
        %v506 = vsel %vm504, %v500, 0
        %508 = vmatprep.subr.bf16.mxu0 0
        %509 = vmatpush1.bf16.msra.mxu0 0
        %510 = vmatprep.subr.bf16.mxu0 0
        %511 = vmatpush1.bf16.msra.mxu0 0
        %512 = vmatprep.subr.bf16.mxu0 0
        %513 = vmatpush1.bf16.msra.mxu0 0
        %514 = vmatprep.subr.bf16.mxu0 0
        %515 = vmatpush1.bf16.msra.mxu0 0
        %516 = vmatprep.subr.bf16.mxu0 0
        %517 = vmatpush1.bf16.msra.mxu0 0
        %518 = vmatprep.subr.bf16.mxu0 0
        %519 = vmatpush1.bf16.msra.mxu0 0
        %520 = vmatprep.subr.bf16.mxu0 0
        %521 = vmatpush1.bf16.msra.mxu0 0
        %522 = vmatprep.subr.bf16.mxu0 0
        %523 = vmatpush1.bf16.msra.mxu0 %v506
        %524 = vmatprep.subr.bf16.mxu0 0
        %525 = vmatpush2.bf16.msra.mxu0 0
        %526 = vmatprep.subr.bf16.mxu0 0
        %527 = vmatpush2.bf16.msra.mxu0 0
        %528 = vmatprep.subr.bf16.mxu0 0
        %529 = vmatpush2.bf16.msra.mxu0 0
        %530 = vmatprep.subr.bf16.mxu0 0
        %531 = vmatpush2.bf16.msra.mxu0 0
        %532 = vmatprep.subr.bf16.mxu0 0
        %533 = vmatpush2.bf16.msra.mxu0 0
        %534 = vmatprep.subr.bf16.mxu0 0
        %535 = vmatpush2.bf16.msra.mxu0 0
        %536 = vmatprep.subr.bf16.mxu0 0
        %537 = vmatpush2.bf16.msra.mxu0 0
        %538 = vmatprep.subr.bf16.mxu0 0
        %539 = vmatpush2.bf16.msra.mxu0 0
        %540 = vmatprep.mubr.bf16.mxu0 0
        %541 = vmatmul.mubr.bf16.gmra.mxu0 %v502
        %v542 = vpop.f32.mrf.mxu0
        %v543 = vadd.f32 0.0, %v542
        %v544 = vpop.f32.mrf.mxu0
        %v545 = vpop.f32.mrf.mxu0
        %v546 = vpop.f32.mrf.mxu0
        %547 = vdwg.mxu0
        %v548 = vadd.f32 %v490, %v543
        %v549 = vrcp.pop %v494
        %v550 = vmul.f32 %v548, %v549
        %551 = vst.msk [vmem:[#allocation3] sm:$0xff] %vm434, %v550
        %v552 = vld [vmem:[#allocation2] sm:$0xf]
        %554 = vrot.lane.b32.xlu0 %v432, 120
        %v555 = vpop.permute.xlu0 %554
        %v557 = vunpack.c.l.b16 %v552
        %v558 = vpack.c.b16 %v557, %v557
        %559 = vrot.lane.b32.xlu0 %v558, 120
        %v560 = vpop.permute.xlu0 %559
        %v562 = vsel %vm434, %v555, 0
        %v565 = vsel %vm434, %v560, 0
        %567 = vmatprep.subr.bf16.mxu0 0
        %568 = vmatpush1.bf16.xpose.msra.mxu0 0
        %569 = vmatprep.subr.bf16.mxu0 0
        %570 = vmatpush1.bf16.xpose.msra.mxu0 0
        %571 = vmatprep.subr.bf16.mxu0 0
        %572 = vmatpush1.bf16.xpose.msra.mxu0 0
        %573 = vmatprep.subr.bf16.mxu0 0
        %574 = vmatpush1.bf16.xpose.msra.mxu0 0
        %575 = vmatprep.subr.bf16.mxu0 0
        %576 = vmatpush1.bf16.xpose.msra.mxu0 0
        %577 = vmatprep.subr.bf16.mxu0 0
        %578 = vmatpush1.bf16.xpose.msra.mxu0 0
        %579 = vmatprep.subr.bf16.mxu0 0
        %580 = vmatpush1.bf16.xpose.msra.mxu0 0
        %581 = vmatprep.subr.bf16.mxu0 0
        %582 = vmatpush1.bf16.xpose.msra.mxu0 %v565
        %583 = vmatprep.subr.bf16.mxu0 0
        %584 = vmatpush2.bf16.xpose.msra.mxu0 0
        %585 = vmatprep.subr.bf16.mxu0 0
        %586 = vmatpush2.bf16.xpose.msra.mxu0 0
        %587 = vmatprep.subr.bf16.mxu0 0
        %588 = vmatpush2.bf16.xpose.msra.mxu0 0
        %589 = vmatprep.subr.bf16.mxu0 0
        %590 = vmatpush2.bf16.xpose.msra.mxu0 0
        %591 = vmatprep.subr.bf16.mxu0 0
        %592 = vmatpush2.bf16.xpose.msra.mxu0 0
        %593 = vmatprep.subr.bf16.mxu0 0
        %594 = vmatpush2.bf16.xpose.msra.mxu0 0
        %595 = vmatprep.subr.bf16.mxu0 0
        %596 = vmatpush2.bf16.xpose.msra.mxu0 0
        %597 = vmatprep.subr.bf16.mxu0 0
        %598 = vmatpush2.bf16.xpose.msra.mxu0 0
        %599 = vmatprep.mubr.bf16.mxu0 0
        %600 = vmatmul.mubr.bf16.gmra.mxu0 %v562
        %v601 = vpop.f32.mrf.mxu0
        %v602 = vadd.f32 0.0, %v601
        %v603 = vpop.f32.mrf.mxu0
        %v604 = vpop.f32.mrf.mxu0
        %v605 = vpop.f32.mrf.mxu0
        %606 = vdwg.mxu0
        %v607 = vsel %vm434, %v602, -inf
        %608 = vmax.xlane.f32.xlu0 %v607
        %v609 = vpop.xlane.xlu0 %608
        %v610 = vsub.f32 -inf, %v609
        %v611 = vmul.f32 %v610, 1.442695
        %v612 = vpow.pop %v611
        %v613 = vsub.f32 %v602, %v609
        %v614 = vmul.f32 %v613, 1.442695
        %v615 = vpow.pop %v614
        %v616 = vmul.f32 %v612, 0.0
        %v617 = vsel %vm434, %v615, 0.0
        %618 = vadd.xlane.f32.xlu0 %v617
        %v619 = vpop.xlane.xlu0 %618
        %v620 = vadd.f32 %v616, %v619
        %v621 = vpack.c.bf16 %v615, %v615
        %622 = vrot.lane.b32.xlu0 %v558, 88
        %v623 = vpop.permute.xlu0 %622
        %v625 = vsel %vm434, %v621, 0
        %v628 = vsel %vm504, %v623, 0
        %630 = vmatprep.subr.bf16.mxu0 0
        %631 = vmatpush1.bf16.msra.mxu0 0
        %632 = vmatprep.subr.bf16.mxu0 0
        %633 = vmatpush1.bf16.msra.mxu0 0
        %634 = vmatprep.subr.bf16.mxu0 0
        %635 = vmatpush1.bf16.msra.mxu0 0
        %636 = vmatprep.subr.bf16.mxu0 0
        %637 = vmatpush1.bf16.msra.mxu0 0
        %638 = vmatprep.subr.bf16.mxu0 0
        %639 = vmatpush1.bf16.msra.mxu0 0
        %640 = vmatprep.subr.bf16.mxu0 0
        %641 = vmatpush1.bf16.msra.mxu0 0
        %642 = vmatprep.subr.bf16.mxu0 0
        %643 = vmatpush1.bf16.msra.mxu0 0
        %644 = vmatprep.subr.bf16.mxu0 0
        %645 = vmatpush1.bf16.msra.mxu0 %v628
        %646 = vmatprep.subr.bf16.mxu0 0
        %647 = vmatpush2.bf16.msra.mxu0 0
        %648 = vmatprep.subr.bf16.mxu0 0
        %649 = vmatpush2.bf16.msra.mxu0 0
        %650 = vmatprep.subr.bf16.mxu0 0
        %651 = vmatpush2.bf16.msra.mxu0 0
        %652 = vmatprep.subr.bf16.mxu0 0
        %653 = vmatpush2.bf16.msra.mxu0 0
        %654 = vmatprep.subr.bf16.mxu0 0
        %655 = vmatpush2.bf16.msra.mxu0 0
        %656 = vmatprep.subr.bf16.mxu0 0
        %657 = vmatpush2.bf16.msra.mxu0 0
        %658 = vmatprep.subr.bf16.mxu0 0
        %659 = vmatpush2.bf16.msra.mxu0 0
        %660 = vmatprep.subr.bf16.mxu0 0
        %661 = vmatpush2.bf16.msra.mxu0 0
        %662 = vmatprep.mubr.bf16.mxu0 0
        %663 = vmatmul.mubr.bf16.gmra.mxu0 %v625
        %v664 = vpop.f32.mrf.mxu0
        %v665 = vadd.f32 0.0, %v664
        %v666 = vpop.f32.mrf.mxu0
        %v667 = vpop.f32.mrf.mxu0
        %v668 = vpop.f32.mrf.mxu0
        %669 = vdwg.mxu0
        %v670 = vadd.f32 %v616, %v665
        %v671 = vrcp.pop %v620
        %v672 = vmul.f32 %v670, %v671
        %674 = vrot.lane.b32.xlu0 %v672, 8
        %v675 = vpop.permute.xlu0 %674
        %vm677 = vcmask 130112
        %678 = vst.msk [vmem:[#allocation3] sm:$0xff] %vm677, %v675
        %v679 = vld [vmem:[#allocation2] sm:$0xf]
        %680 = vrot.lane.b32.xlu0 %v432, 112
        %v681 = vpop.permute.xlu0 %680
        %v683 = vunpack.c.l.b16 %v679
        %v684 = vpack.c.b16 %v683, %v683
        %685 = vrot.lane.b32.xlu0 %v684, 112
        %v686 = vpop.permute.xlu0 %685
        %v688 = vsel %vm434, %v681, 0
        %v691 = vsel %vm434, %v686, 0
        %693 = vmatprep.subr.bf16.mxu0 0
        %694 = vmatpush1.bf16.xpose.msra.mxu0 0
        %695 = vmatprep.subr.bf16.mxu0 0
        %696 = vmatpush1.bf16.xpose.msra.mxu0 0
        %697 = vmatprep.subr.bf16.mxu0 0
        %698 = vmatpush1.bf16.xpose.msra.mxu0 0
        %699 = vmatprep.subr.bf16.mxu0 0
        %700 = vmatpush1.bf16.xpose.msra.mxu0 0
        %701 = vmatprep.subr.bf16.mxu0 0
        %702 = vmatpush1.bf16.xpose.msra.mxu0 0
        %703 = vmatprep.subr.bf16.mxu0 0
        %704 = vmatpush1.bf16.xpose.msra.mxu0 0
        %705 = vmatprep.subr.bf16.mxu0 0
        %706 = vmatpush1.bf16.xpose.msra.mxu0 0
        %707 = vmatprep.subr.bf16.mxu0 0
        %708 = vmatpush1.bf16.xpose.msra.mxu0 %v691
        %709 = vmatprep.subr.bf16.mxu0 0
        %710 = vmatpush2.bf16.xpose.msra.mxu0 0
        %711 = vmatprep.subr.bf16.mxu0 0
        %712 = vmatpush2.bf16.xpose.msra.mxu0 0
        %713 = vmatprep.subr.bf16.mxu0 0
        %714 = vmatpush2.bf16.xpose.msra.mxu0 0
        %715 = vmatprep.subr.bf16.mxu0 0
        %716 = vmatpush2.bf16.xpose.msra.mxu0 0
        %717 = vmatprep.subr.bf16.mxu0 0
        %718 = vmatpush2.bf16.xpose.msra.mxu0 0
        %719 = vmatprep.subr.bf16.mxu0 0
        %720 = vmatpush2.bf16.xpose.msra.mxu0 0
        %721 = vmatprep.subr.bf16.mxu0 0
        %722 = vmatpush2.bf16.xpose.msra.mxu0 0
        %723 = vmatprep.subr.bf16.mxu0 0
        %724 = vmatpush2.bf16.xpose.msra.mxu0 0
        %725 = vmatprep.mubr.bf16.mxu0 0
        %726 = vmatmul.mubr.bf16.gmra.mxu0 %v688
        %v727 = vpop.f32.mrf.mxu0
        %v728 = vadd.f32 0.0, %v727
        %v729 = vpop.f32.mrf.mxu0
        %v730 = vpop.f32.mrf.mxu0
        %v731 = vpop.f32.mrf.mxu0
        %732 = vdwg.mxu0
        %v733 = vsel %vm434, %v728, -inf
        %734 = vmax.xlane.f32.xlu0 %v733
        %v735 = vpop.xlane.xlu0 %734
        %v736 = vsub.f32 -inf, %v735
        %v737 = vmul.f32 %v736, 1.442695
        %v738 = vpow.pop %v737
        %v739 = vsub.f32 %v728, %v735
        %v740 = vmul.f32 %v739, 1.442695
        %v741 = vpow.pop %v740
        %v742 = vmul.f32 %v738, 0.0
        %v743 = vsel %vm434, %v741, 0.0
        %744 = vadd.xlane.f32.xlu0 %v743
        %v745 = vpop.xlane.xlu0 %744
        %v746 = vadd.f32 %v742, %v745
        %v747 = vpack.c.bf16 %v741, %v741
        %748 = vrot.lane.b32.xlu0 %v684, 80
        %v749 = vpop.permute.xlu0 %748
        %v751 = vsel %vm434, %v747, 0
        %v754 = vsel %vm504, %v749, 0
        %756 = vmatprep.subr.bf16.mxu0 0
        %757 = vmatpush1.bf16.msra.mxu0 0
        %758 = vmatprep.subr.bf16.mxu0 0
        %759 = vmatpush1.bf16.msra.mxu0 0
        %760 = vmatprep.subr.bf16.mxu0 0
        %761 = vmatpush1.bf16.msra.mxu0 0
        %762 = vmatprep.subr.bf16.mxu0 0
        %763 = vmatpush1.bf16.msra.mxu0 0
        %764 = vmatprep.subr.bf16.mxu0 0
        %765 = vmatpush1.bf16.msra.mxu0 0
        %766 = vmatprep.subr.bf16.mxu0 0
        %767 = vmatpush1.bf16.msra.mxu0 0
        %768 = vmatprep.subr.bf16.mxu0 0
        %769 = vmatpush1.bf16.msra.mxu0 0
        %770 = vmatprep.subr.bf16.mxu0 0
        %771 = vmatpush1.bf16.msra.mxu0 %v754
        %772 = vmatprep.subr.bf16.mxu0 0
        %773 = vmatpush2.bf16.msra.mxu0 0
        %774 = vmatprep.subr.bf16.mxu0 0
        %775 = vmatpush2.bf16.msra.mxu0 0
        %776 = vmatprep.subr.bf16.mxu0 0
        %777 = vmatpush2.bf16.msra.mxu0 0
        %778 = vmatprep.subr.bf16.mxu0 0
        %779 = vmatpush2.bf16.msra.mxu0 0
        %780 = vmatprep.subr.bf16.mxu0 0
        %781 = vmatpush2.bf16.msra.mxu0 0
        %782 = vmatprep.subr.bf16.mxu0 0
        %783 = vmatpush2.bf16.msra.mxu0 0
        %784 = vmatprep.subr.bf16.mxu0 0
        %785 = vmatpush2.bf16.msra.mxu0 0
        %786 = vmatprep.subr.bf16.mxu0 0
        %787 = vmatpush2.bf16.msra.mxu0 0
        %788 = vmatprep.mubr.bf16.mxu0 0
        %789 = vmatmul.mubr.bf16.gmra.mxu0 %v751
        %v790 = vpop.f32.mrf.mxu0
        %v791 = vadd.f32 0.0, %v790
        %v792 = vpop.f32.mrf.mxu0
        %v793 = vpop.f32.mrf.mxu0
        %v794 = vpop.f32.mrf.mxu0
        %795 = vdwg.mxu0
        %v796 = vadd.f32 %v742, %v791
        %v797 = vrcp.pop %v746
        %v798 = vmul.f32 %v796, %v797
        %800 = vrot.lane.b32.xlu0 %v798, 16
        %v801 = vpop.permute.xlu0 %800
        %vm803 = vcmask 195712
        %804 = vst.msk [vmem:[#allocation3] sm:$0xff] %vm803, %v801
        %v805 = vld [vmem:[#allocation2] sm:$0xf]
        %806 = vrot.lane.b32.xlu0 %v432, 104
        %v807 = vpop.permute.xlu0 %806
        %v809 = vunpack.c.l.b16 %v805
        %v810 = vpack.c.b16 %v809, %v809
        %811 = vrot.lane.b32.xlu0 %v810, 104
        %v812 = vpop.permute.xlu0 %811
        %v814 = vsel %vm434, %v807, 0
        %v817 = vsel %vm434, %v812, 0
        %819 = vmatprep.subr.bf16.mxu0 0
        %820 = vmatpush1.bf16.xpose.msra.mxu0 0
        %821 = vmatprep.subr.bf16.mxu0 0
        %822 = vmatpush1.bf16.xpose.msra.mxu0 0
        %823 = vmatprep.subr.bf16.mxu0 0
        %824 = vmatpush1.bf16.xpose.msra.mxu0 0
        %825 = vmatprep.subr.bf16.mxu0 0
        %826 = vmatpush1.bf16.xpose.msra.mxu0 0
        %827 = vmatprep.subr.bf16.mxu0 0
        %828 = vmatpush1.bf16.xpose.msra.mxu0 0
        %829 = vmatprep.subr.bf16.mxu0 0
        %830 = vmatpush1.bf16.xpose.msra.mxu0 0
        %831 = vmatprep.subr.bf16.mxu0 0
        %832 = vmatpush1.bf16.xpose.msra.mxu0 0
        %833 = vmatprep.subr.bf16.mxu0 0
        %834 = vmatpush1.bf16.xpose.msra.mxu0 %v817
        %835 = vmatprep.subr.bf16.mxu0 0
        %836 = vmatpush2.bf16.xpose.msra.mxu0 0
        %837 = vmatprep.subr.bf16.mxu0 0
        %838 = vmatpush2.bf16.xpose.msra.mxu0 0
        %839 = vmatprep.subr.bf16.mxu0 0
        %840 = vmatpush2.bf16.xpose.msra.mxu0 0
        %841 = vmatprep.subr.bf16.mxu0 0
        %842 = vmatpush2.bf16.xpose.msra.mxu0 0
        %843 = vmatprep.subr.bf16.mxu0 0
        %844 = vmatpush2.bf16.xpose.msra.mxu0 0
        %845 = vmatprep.subr.bf16.mxu0 0
        %846 = vmatpush2.bf16.xpose.msra.mxu0 0
        %847 = vmatprep.subr.bf16.mxu0 0
        %848 = vmatpush2.bf16.xpose.msra.mxu0 0
        %849 = vmatprep.subr.bf16.mxu0 0
        %850 = vmatpush2.bf16.xpose.msra.mxu0 0
        %851 = vmatprep.mubr.bf16.mxu0 0
        %852 = vmatmul.mubr.bf16.gmra.mxu0 %v814
        %v853 = vpop.f32.mrf.mxu0
        %v854 = vadd.f32 0.0, %v853
        %v855 = vpop.f32.mrf.mxu0
        %v856 = vpop.f32.mrf.mxu0
        %v857 = vpop.f32.mrf.mxu0
        %858 = vdwg.mxu0
        %v859 = vsel %vm434, %v854, -inf
        %860 = vmax.xlane.f32.xlu0 %v859
        %v861 = vpop.xlane.xlu0 %860
        %v862 = vsub.f32 -inf, %v861
        %v863 = vmul.f32 %v862, 1.442695
        %v864 = vpow.pop %v863
        %v865 = vsub.f32 %v854, %v861
        %v866 = vmul.f32 %v865, 1.442695
        %v867 = vpow.pop %v866
        %v868 = vmul.f32 %v864, 0.0
        %v869 = vsel %vm434, %v867, 0.0
        %870 = vadd.xlane.f32.xlu0 %v869
        %v871 = vpop.xlane.xlu0 %870
        %v872 = vadd.f32 %v868, %v871
        %v873 = vpack.c.bf16 %v867, %v867
        %874 = vrot.lane.b32.xlu0 %v810, 72
        %v875 = vpop.permute.xlu0 %874
        %v877 = vsel %vm434, %v873, 0
        %v880 = vsel %vm504, %v875, 0
        %882 = vmatprep.subr.bf16.mxu0 0
        %883 = vmatpush1.bf16.msra.mxu0 0
        %884 = vmatprep.subr.bf16.mxu0 0
        %885 = vmatpush1.bf16.msra.mxu0 0
        %886 = vmatprep.subr.bf16.mxu0 0
        %887 = vmatpush1.bf16.msra.mxu0 0
        %888 = vmatprep.subr.bf16.mxu0 0
        %889 = vmatpush1.bf16.msra.mxu0 0
        %890 = vmatprep.subr.bf16.mxu0 0
        %891 = vmatpush1.bf16.msra.mxu0 0
        %892 = vmatprep.subr.bf16.mxu0 0
        %893 = vmatpush1.bf16.msra.mxu0 0
        %894 = vmatprep.subr.bf16.mxu0 0
        %895 = vmatpush1.bf16.msra.mxu0 0
        %896 = vmatprep.subr.bf16.mxu0 0
        %897 = vmatpush1.bf16.msra.mxu0 %v880
        %898 = vmatprep.subr.bf16.mxu0 0
        %899 = vmatpush2.bf16.msra.mxu0 0
        %900 = vmatprep.subr.bf16.mxu0 0
        %901 = vmatpush2.bf16.msra.mxu0 0
        %902 = vmatprep.subr.bf16.mxu0 0
        %903 = vmatpush2.bf16.msra.mxu0 0
        %904 = vmatprep.subr.bf16.mxu0 0
        %905 = vmatpush2.bf16.msra.mxu0 0
        %906 = vmatprep.subr.bf16.mxu0 0
        %907 = vmatpush2.bf16.msra.mxu0 0
        %908 = vmatprep.subr.bf16.mxu0 0
        %909 = vmatpush2.bf16.msra.mxu0 0
        %910 = vmatprep.subr.bf16.mxu0 0
        %911 = vmatpush2.bf16.msra.mxu0 0
        %912 = vmatprep.subr.bf16.mxu0 0
        %913 = vmatpush2.bf16.msra.mxu0 0
        %914 = vmatprep.mubr.bf16.mxu0 0
        %915 = vmatmul.mubr.bf16.gmra.mxu0 %v877
        %v916 = vpop.f32.mrf.mxu0
        %v917 = vadd.f32 0.0, %v916
        %v918 = vpop.f32.mrf.mxu0
        %v919 = vpop.f32.mrf.mxu0
        %v920 = vpop.f32.mrf.mxu0
        %921 = vdwg.mxu0
        %v922 = vadd.f32 %v868, %v917
        %v923 = vrcp.pop %v872
        %v924 = vmul.f32 %v922, %v923
        %926 = vrot.lane.b32.xlu0 %v924, 24
        %v927 = vpop.permute.xlu0 %926
        %vm929 = vcmask 261312
        %930 = vst.msk [vmem:[#allocation3] sm:$0xff] %vm929, %v927
        %v931 = vld [vmem:[#allocation3] sm:$0xff]
        %932 = vst.msk [vmem:[%s282] sm:$0xff] %vm387, %v931
        %s933 = sand.u32 %s155, 1
        %s934 = scalar_lea.sflag [#allocation6], %s933
        %s935 = sand.u32 %s155, 1
        %s936 = smul.addr %s935, 8
        %s937 = scalar_lea.vmem [#allocation10], %s936
        // Predicated region
        $region57: #{tpu_custom_call.1} parent=39 // pred_check
          %p938 = pneg %p165
        $region58: #{tpu_custom_call.1} parent=39 // pred_check_branch
          %940 = sbr.rel (%p938) target = $region60
        $region59: #{tpu_custom_call.1} parent=39 // pred_region
          %s942 = ssub.s32 128, 128
          %943 = vsyncadd %s934, %s942
          %s944 = sadd.s32 %s28, %s27
          %s945 = smul.addr %s944, 128
          %s946 = scalar_lea.hbm %s5, %s945
          %s948 = sshll.u32 %s937, 4
          %s949 = int_to_ptr.vmem [resolvable:$true] %s948
          %951 = dma.vmem_to_hbm [thread:$0]  %s949, 128, %s946, %s934
        $region60: #{tpu_custom_call.1} parent=39 // pred_fallthru
          _
      $region40: #{tpu_custom_call.1} parent=5 // pred_fallthru
        _
      %p952 = scmp.le.s32.totalorder 2, %s18
      // Predicated region
      $region61: #{tpu_custom_call.1} parent=5 // pred_check
        %p953 = pneg %p952
      $region62: #{tpu_custom_call.1} parent=5 // pred_check_branch
        %955 = sbr.rel (%p953) target = $region64
      $region63: #{tpu_custom_call.1} parent=5 // pred_region
        %s956 = ssub.s32 %s18, 2
        // Predicated region
        $region65: #{tpu_custom_call.1} parent=63 // pred_check
          %p957 = pneg %p171
        $region66: #{tpu_custom_call.1} parent=63 // pred_check_branch
          %959 = sbr.rel (%p957) target = $region68
        $region67: #{tpu_custom_call.1} parent=63 // pred_region
          %s960 = sand.u32 %s156, 1
          %s961 = scalar_lea.sflag [#allocation6], %s960
          %s962 = sand.u32 %s156, 1
          %s963 = smul.addr %s962, 8
          %s964 = scalar_lea.vmem [#allocation10], %s963
          %965 = dma.done %s961, 128
        $region68: #{tpu_custom_call.1} parent=63 // pred_fallthru
          _
      $region64: #{tpu_custom_call.1} parent=5 // pred_fallthru
        _
    $region6: #{tpu_custom_call.1} parent=1 // loop_footer
      %s22 = sadd.s32 1, %s18
    $region7: #{tpu_custom_call.1} parent=1 // loop_footer_branch
      %17 = sbr.rel target = $region3
    $region8: #{tpu_custom_call.1} parent=1 // loop_exit
      _
    %966 = vsyncpa [#allocation5], 1
    %s967 = scalar_lea.sflag [#allocation5], 1
    %968 = vsyncpa %s967, 1
    %969 = vsyncpa [#allocation8], 1
    %970 = vsyncpa [#allocation6], 1
    %s971 = scalar_lea.sflag [#allocation6], 1
    %972 = vsyncpa %s971, 1

</llo_original>
